<compile_context>
chip_gen: v7x
topology: tpu7x:2x2x1
jax: 0.10.0
libtpu: 0.0.40
codegen_flags: <defaults>
</compile_context>

<pallas_src>
import functools

import jax
import jax.numpy as jnp
from jax.experimental import pallas as pl
from jax.experimental.pallas import tpu as pltpu


def _round_up(v, m):
    return (v + m - 1) // m * m


# ----------------------------------------------------------------------------
# Fused kernel:
#   h = x @ W1 + b1        (hook "fc1")
#   r = relu(h)            (hook "relu")
#   y = r @ W2 + b2        (hook "fc2" == model output)
# Weights arrive pre-transposed: W1 is (in_p, hid_p), W2 is (hid_p, out_p),
# all matmul dims zero-padded to 128 -> lane-dense unmasked stores, full MXU
# tiles, no in-kernel transpose (no XLU vxpose).
# ----------------------------------------------------------------------------
def _mlp_verbose_kernel(x_ref, w1_ref, b1_ref, w2_ref, b2_ref,
                        act1_ref, relu_ref, out_ref):
    # fc1: MXU matmul, bias fused into the post-matmul epilogue add (VPU)
    h = jnp.dot(x_ref[...], w1_ref[...],
                preferred_element_type=jnp.float32) + b1_ref[...]
    act1_ref[...] = h                     # hook "fc1" (f32, lane-dense store)

    # relu hook: r is already in vregs; storing costs one extra vst + DMA,
    # both of which have slack here (saves an HBM round-trip in the wrapper).
    r = jnp.maximum(h, 0.0)
    relu_ref[...] = r                     # hook "relu"

    # fc2: cast r to operand dtype (no-op for f32, bf16 under the opt-in flag)
    out_ref[...] = jnp.dot(r.astype(w2_ref.dtype), w2_ref[...],
                           preferred_element_type=jnp.float32) + b2_ref[...]


# ----------------------------------------------------------------------------
# Jitted forward over pre-padded weights. Padding of x, the pallas_call, and
# the un-padding slices all compile into a single program.
# ----------------------------------------------------------------------------
@functools.partial(jax.jit,
                   static_argnames=("in_f", "hidden", "out_f", "batch_tile"))
def _mlp_verbose_padded(x, w1t, b1p, w2t, b2p, *, in_f, hidden, out_f,
                        batch_tile):
    batch = x.shape[0]
    in_p, hid_p = w1t.shape
    out_p = w2t.shape[1]
    op_dtype = w1t.dtype
    itemsize = jnp.dtype(op_dtype).itemsize

    # ---- batch tile: as large as allowed (fewer ~0.35us grid steps), a
    # ---- multiple of 8 (sublane), and split into >=2 tiles when the batch
    # ---- permits so v7x's two TensorCores both get work under "parallel".
    bt = min(batch_tile, _round_up(batch, 8))
    if batch >= 16:
        bt = min(bt, _round_up(pl.cdiv(batch, 2), 8))
    bt = max(8, (bt // 8) * 8)
    batch_p = _round_up(batch, bt)

    # ---- VMEM budget check for the weight-resident strategy (v7x scoped
    # ---- default is 32 MiB of its 64 MiB physical). Conservatively assume
    # ---- the pipeline double-buffers even the constant-index weight blocks.
    vmem_budget = 32 * 1024 * 1024
    w_bytes = 2 * (in_p * hid_p + hid_p * out_p) * itemsize

    def _tile_bytes(b):
        # double-buffered x tile + act1/relu/out f32 tiles
        return 2 * b * (in_p * itemsize + (2 * hid_p + out_p) * 4)

    while bt > 8 and w_bytes + _tile_bytes(bt) > vmem_budget:
        bt = max(8, ((bt // 2) // 8) * 8)
        batch_p = _round_up(batch, bt)
    # TODO(synk): if the resident weights alone exceed the budget (e.g.
    # hidden ~4096 f32 on v7x), switch to tiling hid/out with a K grid axis
    # + VMEM accumulator instead of the weight-resident strategy.

    # Zero-pad x (exact: padded K columns contribute 0 to the matmul).
    x_p = jnp.zeros((batch_p, in_p), op_dtype).at[:batch, :in_f].set(
        x.astype(op_dtype))

    grid = (batch_p // bt,)

    act1_p, relu_p, y_p = pl.pallas_call(
        _mlp_verbose_kernel,
        out_shape=(
            jax.ShapeDtypeStruct((batch_p, hid_p), jnp.float32),   # fc1 hook
            jax.ShapeDtypeStruct((batch_p, hid_p), jnp.float32),   # relu hook
            jax.ShapeDtypeStruct((batch_p, out_p), jnp.float32),   # fc2 / out
        ),
        grid_spec=pltpu.PrefetchScalarGridSpec(
            num_scalar_prefetch=0,
            grid=grid,
            in_specs=[
                pl.BlockSpec((bt, in_p), lambda i: (i, 0)),      # x tile
                pl.BlockSpec((in_p, hid_p), lambda i: (0, 0)),   # W1 (resident)
                pl.BlockSpec((1, hid_p), lambda i: (0, 0)),      # b1 (resident)
                pl.BlockSpec((hid_p, out_p), lambda i: (0, 0)),  # W2 (resident)
                pl.BlockSpec((1, out_p), lambda i: (0, 0)),      # b2 (resident)
            ],
            out_specs=(
                pl.BlockSpec((bt, hid_p), lambda i: (i, 0)),     # fc1 hook
                pl.BlockSpec((bt, hid_p), lambda i: (i, 0)),     # relu hook
                pl.BlockSpec((bt, out_p), lambda i: (i, 0)),     # output
            ),
        ),
        compiler_params=pltpu.CompilerParams(
            dimension_semantics=("parallel",),   # megacore / v7x 2-TC split
            vmem_limit_bytes=vmem_budget,        # explicit, v7x-safe budget
        ),
    )(x_p, w1t, b1p, w2t, b2p)

    # Un-pad inside the jit so XLA fuses the slices with their consumers.
    # NOTE: never consume the padded arrays directly — padded act1 rows equal
    # b1 (0 @ W1 + b1), not zero.
    act1 = act1_p[:batch, :hidden]
    relu = relu_p[:batch, :hidden]
    y = y_p[:batch, :out_f]
    return y, act1, relu


# ----------------------------------------------------------------------------
# JAX-side analogue of the VerboseExecution wrapper ("forward hooks" on every
# leaf layer of the wrapped model: fc1, relu, fc2).
# ----------------------------------------------------------------------------
class VerboseExecution:
    """Wraps the MLP; forward() returns model(x) and records every leaf-layer
    activation (equivalent to register_forward_hook on all leaf modules)."""

    def __init__(self, params, *, use_bf16=False, batch_tile=512):
        self.activations = []
        self._layer_names = ["fc1", "relu", "fc2"]
        self._batch_tile = int(batch_tile)

        w1, b1 = params["fc1_w"], params["fc1_b"]   # PyTorch layout (out, in)
        w2, b2 = params["fc2_w"], params["fc2_b"]
        self._in_f = int(w1.shape[1])
        self._hidden = int(w1.shape[0])
        self._out_f = int(w2.shape[0])

        in_p = _round_up(self._in_f, 128)
        hid_p = _round_up(self._hidden, 128)
        out_p = _round_up(self._out_f, 128)
        op_dtype = jnp.bfloat16 if use_bf16 else jnp.float32

        # One-time layout plumbing (cached across forward() calls):
        # transpose to (in, out) so the MXU is fed directly, zero-pad every
        # matmul dim to the 128-lane width.
        self._w1t = jnp.zeros((in_p, hid_p), op_dtype).at[
            :self._in_f, :self._hidden].set(w1.T.astype(op_dtype))
        self._b1p = jnp.zeros((1, hid_p), jnp.float32).at[
            :, :self._hidden].set(jnp.reshape(b1, (1, -1)).astype(jnp.float32))
        self._w2t = jnp.zeros((hid_p, out_p), op_dtype).at[
            :self._hidden, :self._out_f].set(w2.T.astype(op_dtype))
        self._b2p = jnp.zeros((1, out_p), jnp.float32).at[
            :, :self._out_f].set(jnp.reshape(b2, (1, -1)).astype(jnp.float32))

    def forward(self, x):
        self.activations = []          # reset, like the torch version
        y, act1, relu = _mlp_verbose_padded(
            x, self._w1t, self._b1p, self._w2t, self._b2p,
            in_f=self._in_f, hidden=self._hidden, out_f=self._out_f,
            batch_tile=self._batch_tile)
        self.activations = [act1, relu, y]
        return y

    def getLayers(self):
        # TODO(synk): PyTorch introspects named_children() dynamically; the
        # JAX analogue uses the fixed leaf-layer list of the wrapped MLP.
        return list(self._layer_names)


# ----------------------------------------------------------------------------
# Main
# ----------------------------------------------------------------------------
if __name__ == "__main__":
    batch, in_f, hidden, out_f = 8, 32, 64, 16

    key = jax.random.PRNGKey(0)
    k_x, k_w1, k_b1, k_w2, k_b2 = jax.random.split(key, 5)

    x = jax.random.normal(k_x, (batch, in_f), dtype=jnp.float32)

    params = {
        # PyTorch Linear weight layout: (out_features, in_features)
        "fc1_w": jax.random.normal(k_w1, (hidden, in_f), dtype=jnp.float32) * 0.1,
        "fc1_b": jax.random.normal(k_b1, (hidden,), dtype=jnp.float32) * 0.1,
        "fc2_w": jax.random.normal(k_w2, (out_f, hidden), dtype=jnp.float32) * 0.1,
        "fc2_b": jax.random.normal(k_b2, (out_f,), dtype=jnp.float32) * 0.1,
    }

    model = VerboseExecution(params)
    out = model.forward(x)
    out = jax.block_until_ready(out)

    # Reference check (plain JAX) to validate hook semantics + math.
    h_ref = x @ params["fc1_w"].T + params["fc1_b"]
    r_ref = jnp.maximum(h_ref, 0.0)
    y_ref = r_ref @ params["fc2_w"].T + params["fc2_b"]

    assert len(model.activations) == 3
    assert jnp.allclose(model.activations[0], h_ref, atol=1e-5)
    assert jnp.allclose(model.activations[1], r_ref, atol=1e-5)
    assert jnp.allclose(model.activations[2], y_ref, atol=1e-5)
    assert jnp.allclose(out, y_ref, atol=1e-5)
    assert model.getLayers() == ["fc1", "relu", "fc2"]

    print("KERNEL_OK")
</pallas_src>

<mosaic_0001>
module attributes {stable_mosaic.version = 11 : i64} {
  func.func @_mlp_verbose_kernel(%arg0: i32, %arg1: memref<8x128xf32, #tpu.memory_space<vmem>>, %arg2: memref<128x128xf32, #tpu.memory_space<vmem>>, %arg3: memref<1x128xf32, #tpu.memory_space<vmem>>, %arg4: memref<128x128xf32, #tpu.memory_space<vmem>>, %arg5: memref<1x128xf32, #tpu.memory_space<vmem>>, %arg6: memref<8x128xf32, #tpu.memory_space<vmem>>, %arg7: memref<8x128xf32, #tpu.memory_space<vmem>>, %arg8: memref<8x128xf32, #tpu.memory_space<vmem>>) attributes {dimension_semantics = [#tpu.dimension_semantics<parallel>], iteration_bounds = array<i64: 1>, scalar_prefetch = 0 : i64, scratch_operands = 0 : i64, tpu.core_type = #tpu.core_type<tc>, window_params = [{transform_indices = @transform_0, window_bounds = array<i64: 8, 128>}, {pipeline_mode = #tpu.pipeline_mode<synchronous>, transform_indices = @transform_1, window_bounds = array<i64: 128, 128>}, {pipeline_mode = #tpu.pipeline_mode<synchronous>, transform_indices = @transform_2, window_bounds = array<i64: 1, 128>}, {pipeline_mode = #tpu.pipeline_mode<synchronous>, transform_indices = @transform_3, window_bounds = array<i64: 128, 128>}, {pipeline_mode = #tpu.pipeline_mode<synchronous>, transform_indices = @transform_4, window_bounds = array<i64: 1, 128>}, {transform_indices = @transform_5, window_bounds = array<i64: 8, 128>}, {transform_indices = @transform_6, window_bounds = array<i64: 8, 128>}, {transform_indices = @transform_7, window_bounds = array<i64: 8, 128>}]} {
    %c0 = arith.constant 0 : index
    %c0_0 = arith.constant 0 : index
    %0 = vector.load %arg1[%c0, %c0_0] : memref<8x128xf32, #tpu.memory_space<vmem>>, vector<8x128xf32>
    %c0_1 = arith.constant 0 : index
    %c0_2 = arith.constant 0 : index
    %1 = vector.load %arg2[%c0_1, %c0_2] : memref<128x128xf32, #tpu.memory_space<vmem>>, vector<128x128xf32>
    %cst = arith.constant dense<0.000000e+00> : vector<8x128xf32>
    %2 = tpu.matmul %0, %1, %cst {dimension_numbers = #tpu.dot_dimension_numbers<[1], [0], [0], [1], [0, 0, 1, 1], [], []>} : vector<8x128xf32>, vector<128x128xf32>, vector<8x128xf32> -> vector<8x128xf32>
    %c0_3 = arith.constant 0 : index
    %c0_4 = arith.constant 0 : index
    %3 = vector.load %arg3[%c0_3, %c0_4] : memref<1x128xf32, #tpu.memory_space<vmem>>, vector<1x128xf32>
    %4 = vector.broadcast %3 : vector<1x128xf32> to vector<8x128xf32>
    %5 = arith.addf %2, %4 : vector<8x128xf32>
    %c0_5 = arith.constant 0 : index
    %c0_6 = arith.constant 0 : index
    %6 = vector.load %arg6[%c0_5, %c0_6] : memref<8x128xf32, #tpu.memory_space<vmem>>, vector<8x128xf32>
    tpu.vector_store %arg6[%c0_5, %c0_6], %5 {strides = array<i32>} : memref<8x128xf32, #tpu.memory_space<vmem>>, vector<8x128xf32>,
    %cst_7 = arith.constant 0.000000e+00 : f32
    %7 = vector.broadcast %cst_7 : f32 to vector<8x128xf32>
    %8 = arith.maximumf %5, %7 : vector<8x128xf32>
    %c0_8 = arith.constant 0 : index
    %c0_9 = arith.constant 0 : index
    %9 = vector.load %arg7[%c0_8, %c0_9] : memref<8x128xf32, #tpu.memory_space<vmem>>, vector<8x128xf32>
    tpu.vector_store %arg7[%c0_8, %c0_9], %8 {strides = array<i32>} : memref<8x128xf32, #tpu.memory_space<vmem>>, vector<8x128xf32>,
    %c0_10 = arith.constant 0 : index
    %c0_11 = arith.constant 0 : index
    %10 = vector.load %arg4[%c0_10, %c0_11] : memref<128x128xf32, #tpu.memory_space<vmem>>, vector<128x128xf32>
    %cst_12 = arith.constant dense<0.000000e+00> : vector<8x128xf32>
    %11 = tpu.matmul %8, %10, %cst_12 {dimension_numbers = #tpu.dot_dimension_numbers<[1], [0], [0], [1], [0, 0, 1, 1], [], []>} : vector<8x128xf32>, vector<128x128xf32>, vector<8x128xf32> -> vector<8x128xf32>
    %c0_13 = arith.constant 0 : index
    %c0_14 = arith.constant 0 : index
    %12 = vector.load %arg5[%c0_13, %c0_14] : memref<1x128xf32, #tpu.memory_space<vmem>>, vector<1x128xf32>
    %13 = vector.broadcast %12 : vector<1x128xf32> to vector<8x128xf32>
    %14 = arith.addf %11, %13 : vector<8x128xf32>
    %c0_15 = arith.constant 0 : index
    %c0_16 = arith.constant 0 : index
    %15 = vector.load %arg8[%c0_15, %c0_16] : memref<8x128xf32, #tpu.memory_space<vmem>>, vector<8x128xf32>
    tpu.vector_store %arg8[%c0_15, %c0_16], %14 {strides = array<i32>} : memref<8x128xf32, #tpu.memory_space<vmem>>, vector<8x128xf32>,
    return
  }
  func.func @transform_0(%arg0: i32) -> (i32, i32) {
    %c0_i32 = arith.constant 0 : i32
    %c0_i32_0 = arith.constant 0 : i32
    return %arg0, %c0_i32 : i32, i32
  }
  func.func @transform_1(%arg0: i32) -> (i32, i32) {
    %c0_i32 = arith.constant 0 : i32
    %c0_i32_0 = arith.constant 0 : i32
    %c0_i32_1 = arith.constant 0 : i32
    return %c0_i32, %c0_i32_0 : i32, i32
  }
  func.func @transform_2(%arg0: i32) -> (i32, i32) {
    %c0_i32 = arith.constant 0 : i32
    %c0_i32_0 = arith.constant 0 : i32
    %c0_i32_1 = arith.constant 0 : i32
    return %c0_i32, %c0_i32_0 : i32, i32
  }
  func.func @transform_3(%arg0: i32) -> (i32, i32) {
    %c0_i32 = arith.constant 0 : i32
    %c0_i32_0 = arith.constant 0 : i32
    %c0_i32_1 = arith.constant 0 : i32
    return %c0_i32, %c0_i32_0 : i32, i32
  }
  func.func @transform_4(%arg0: i32) -> (i32, i32) {
    %c0_i32 = arith.constant 0 : i32
    %c0_i32_0 = arith.constant 0 : i32
    %c0_i32_1 = arith.constant 0 : i32
    return %c0_i32, %c0_i32_0 : i32, i32
  }
  func.func @transform_5(%arg0: i32) -> (i32, i32) {
    %c0_i32 = arith.constant 0 : i32
    %c0_i32_0 = arith.constant 0 : i32
    return %arg0, %c0_i32 : i32, i32
  }
  func.func @transform_6(%arg0: i32) -> (i32, i32) {
    %c0_i32 = arith.constant 0 : i32
    %c0_i32_0 = arith.constant 0 : i32
    return %arg0, %c0_i32 : i32, i32
  }
  func.func @transform_7(%arg0: i32) -> (i32, i32) {
    %c0_i32 = arith.constant 0 : i32
    %c0_i32_0 = arith.constant 0 : i32
    return %arg0, %c0_i32 : i32, i32
  }
}

</mosaic_0001>

<llo_original>
// kernel: _mlp_verbose_padded.1
$region0: #{_mlp_verbose_padded.1}
  #allocation0 [shape = 'u32[]', space=smem, size = 0x4, offset = 0x4, fixed_abs, tag = 'smem constant byte address 0x4 - core index']
  #allocation1 [shape = 'u32[144,128]{1,0:T(1,128)}', space=vmem, size = 0x12000, scoped, tag = 'internal scratch']
  %s0 = inlined_call_operand.vmem [shape: f32[8,128], index: 0, kind: input, shape index: {}]
  %s1 = inlined_call_operand.hbm [shape: f32[128,128], index: 1, kind: input, shape index: {}]
  %s2 = inlined_call_operand.vmem [shape: f32[1,128], index: 2, kind: input, shape index: {}]
  %s3 = inlined_call_operand.hbm [shape: f32[128,128], index: 3, kind: input, shape index: {}]
  %s4 = inlined_call_operand.vmem [shape: f32[1,128], index: 4, kind: input, shape index: {}]
  %s5 = inlined_call_operand.hbm [shape: f32[8,128], index: 5, kind: output, shape index: {0}]
  %s6 = inlined_call_operand.hbm [shape: f32[8,128], index: 6, kind: output, shape index: {1}]
  %s7 = inlined_call_operand.hbm [shape: f32[8,128], index: 7, kind: output, shape index: {2}]
  %8 = xla_tuple %s5, %s6, %s7
  %s9 = sld [smem:[#allocation0]]
  $region54: #{_mlp_verbose_padded.1} parent=0
    _
  %s11 = ssub.s32 1, %s9
  %s12 = scalar_select 0, %s11, %s9
  $region1: #{_mlp_verbose_padded.1} parent=0
    #allocation2 [shape = 'u8[65536]{0}', space=vmem, size = 0x10000, scoped, tag = 'input window, operand 1, single buffered']
    #allocation3 [shape = 's32[1]{0}', space=sflag, size = 0x4, scoped, tag = 'scoped memory for _mlp_verbose_padded.1']
    #allocation4 [shape = 's32[1]{0}', space=sflag, size = 0x4, scoped, tag = 'scoped memory for _mlp_verbose_padded.1']
    #allocation5 [shape = 'u8[65536]{0}', space=vmem, size = 0x10000, scoped, tag = 'input window, operand 3, single buffered']
    #allocation6 [shape = 's32[1]{0}', space=sflag, size = 0x4, scoped, tag = 'scoped memory for _mlp_verbose_padded.1']
    #allocation7 [shape = 'u8[4096]{0}', space=vmem, size = 0x1000, scoped, tag = 'output window, operand 0, single buffered']
    #allocation8 [shape = 'u8[4096]{0}', space=vmem, size = 0x1000, scoped, tag = 'output window, operand 1, single buffered']
    #allocation9 [shape = 's32[1]{0}', space=sflag, size = 0x4, scoped, tag = 'scoped memory for _mlp_verbose_padded.1']
    #allocation10 [shape = 'u8[4096]{0}', space=vmem, size = 0x1000, scoped, tag = 'output window, operand 2, single buffered']
    %13 = vsyncpa [#allocation3], 0
    %14 = vsyncpa [#allocation6], 0
    %15 = vsyncpa [#allocation4], 0
    %16 = vsyncpa [#allocation9], 0
    // Predicated region
    $region2: #{_mlp_verbose_padded.1} parent=1 // pred_check
      _
    $region3: #{_mlp_verbose_padded.1} parent=1 // pred_check_branch
      %18 = sbr.rel (0) target = $region5
    $region4: #{_mlp_verbose_padded.1} parent=1 // pred_region
      _
    $region5: #{_mlp_verbose_padded.1} parent=1 // pred_fallthru
      _
    // Predicated region
    $region6: #{_mlp_verbose_padded.1} parent=1 // pred_check
      _
    $region7: #{_mlp_verbose_padded.1} parent=1 // pred_check_branch
      %20 = sbr.rel (0) target = $region9
    $region8: #{_mlp_verbose_padded.1} parent=1 // pred_region
      %s22 = ssub.s32 2048, 2048
      %23 = vsyncadd [#allocation3], %s22
      %s24 = sshll.u32 [#allocation2], 4
      %s25 = int_to_ptr.vmem [resolvable:$true] %s24
      %30 = dma.hbm_to_vmem [thread:$0]  %s1, 2048, %s25, [#allocation3], 128, 128, 8
    $region9: #{_mlp_verbose_padded.1} parent=1 // pred_fallthru
      _
    // Predicated region
    $region10: #{_mlp_verbose_padded.1} parent=1 // pred_check
      _
    $region11: #{_mlp_verbose_padded.1} parent=1 // pred_check_branch
      %32 = sbr.rel (0) target = $region13
    $region12: #{_mlp_verbose_padded.1} parent=1 // pred_region
      _
    $region13: #{_mlp_verbose_padded.1} parent=1 // pred_fallthru
      _
    // Predicated region
    $region14: #{_mlp_verbose_padded.1} parent=1 // pred_check
      _
    $region15: #{_mlp_verbose_padded.1} parent=1 // pred_check_branch
      %34 = sbr.rel (0) target = $region17
    $region16: #{_mlp_verbose_padded.1} parent=1 // pred_region
      %s36 = ssub.s32 2048, 2048
      %37 = vsyncadd [#allocation6], %s36
      %s38 = sshll.u32 [#allocation5], 4
      %s39 = int_to_ptr.vmem [resolvable:$true] %s38
      %44 = dma.hbm_to_vmem [thread:$0]  %s3, 2048, %s39, [#allocation6], 128, 128, 8
    $region17: #{_mlp_verbose_padded.1} parent=1 // pred_fallthru
      _
    // Predicated region
    $region18: #{_mlp_verbose_padded.1} parent=1 // pred_check
      _
    $region19: #{_mlp_verbose_padded.1} parent=1 // pred_check_branch
      %46 = sbr.rel (0) target = $region21
    $region20: #{_mlp_verbose_padded.1} parent=1 // pred_region
      _
    $region21: #{_mlp_verbose_padded.1} parent=1 // pred_fallthru
      _
    // Predicated region
    $region22: #{_mlp_verbose_padded.1} parent=1 // pred_check
      _
    $region23: #{_mlp_verbose_padded.1} parent=1 // pred_check_branch
      %48 = sbr.rel (0) target = $region25
    $region24: #{_mlp_verbose_padded.1} parent=1 // pred_region
      %49 = dma.done [#allocation3], 2048
    $region25: #{_mlp_verbose_padded.1} parent=1 // pred_fallthru
      _
    // Predicated region
    $region26: #{_mlp_verbose_padded.1} parent=1 // pred_check
      _
    $region27: #{_mlp_verbose_padded.1} parent=1 // pred_check_branch
      %51 = sbr.rel (0) target = $region29
    $region28: #{_mlp_verbose_padded.1} parent=1 // pred_region
      %52 = dma.done [#allocation6], 2048
    $region29: #{_mlp_verbose_padded.1} parent=1 // pred_fallthru
      _
    %v53 = vld [vmem:[%s0] sm:$0xff]
    %v54 = vld [vmem:[#allocation2] sm:$0xff]
    %v55 = vld [vmem:[#allocation2 + $0x8] sm:$0xff]
    %v56 = vld [vmem:[#allocation2 + $0x10] sm:$0xff]
    %v57 = vld [vmem:[#allocation2 + $0x18] sm:$0xff]
    %v58 = vld [vmem:[#allocation2 + $0x20] sm:$0xff]
    %v59 = vld [vmem:[#allocation2 + $0x28] sm:$0xff]
    %v60 = vld [vmem:[#allocation2 + $0x30] sm:$0xff]
    %v61 = vld [vmem:[#allocation2 + $0x38] sm:$0xff]
    %v62 = vld [vmem:[#allocation2 + $0x40] sm:$0xff]
    %v63 = vld [vmem:[#allocation2 + $0x48] sm:$0xff]
    %v64 = vld [vmem:[#allocation2 + $0x50] sm:$0xff]
    %v65 = vld [vmem:[#allocation2 + $0x58] sm:$0xff]
    %v66 = vld [vmem:[#allocation2 + $0x60] sm:$0xff]
    %v67 = vld [vmem:[#allocation2 + $0x68] sm:$0xff]
    %v68 = vld [vmem:[#allocation2 + $0x70] sm:$0xff]
    %v69 = vld [vmem:[#allocation2 + $0x78] sm:$0xff]
    %v70 = vld [vmem:[%s2] sm:$0x1]
    %v72 = vlaneseq
    %v73 = vshrl.u32 %v72, 7
    %v74 = vsub.s32 0, %v73
    %v75 = vrot.slane %v70, %v74
    %77 = vmatprep.subr.mxu0 0.0
    %78 = vmatpush1.msra.mxu0 %v54
    %79 = vmatprep.subr.mxu0 0.0
    %80 = vmatpush1.msra.mxu0 %v55
    %81 = vmatprep.subr.mxu0 0.0
    %82 = vmatpush1.msra.mxu0 %v56
    %83 = vmatprep.subr.mxu0 0.0
    %84 = vmatpush1.msra.mxu0 %v57
    %85 = vmatprep.subr.mxu0 0.0
    %86 = vmatpush1.msra.mxu0 %v58
    %87 = vmatprep.subr.mxu0 0.0
    %88 = vmatpush1.msra.mxu0 %v59
    %89 = vmatprep.subr.mxu0 0.0
    %90 = vmatpush1.msra.mxu0 %v60
    %91 = vmatprep.subr.mxu0 0.0
    %92 = vmatpush1.msra.mxu0 %v61
    %93 = vmatprep.subr.mxu0 0.0
    %94 = vmatpush1.msra.mxu0 %v62
    %95 = vmatprep.subr.mxu0 0.0
    %96 = vmatpush1.msra.mxu0 %v63
    %97 = vmatprep.subr.mxu0 0.0
    %98 = vmatpush1.msra.mxu0 %v64
    %99 = vmatprep.subr.mxu0 0.0
    %100 = vmatpush1.msra.mxu0 %v65
    %101 = vmatprep.subr.mxu0 0.0
    %102 = vmatpush1.msra.mxu0 %v66
    %103 = vmatprep.subr.mxu0 0.0
    %104 = vmatpush1.msra.mxu0 %v67
    %105 = vmatprep.subr.mxu0 0.0
    %106 = vmatpush1.msra.mxu0 %v68
    %107 = vmatprep.subr.mxu0 0.0
    %108 = vmatpush1.msra.mxu0 %v69
    %109 = vmatprep.subr.mxu0 0.0
    %110 = vmatpush1.msra.mxu0 0.0
    %111 = vmatprep.subr.mxu0 0.0
    %112 = vmatpush1.msra.mxu0 0.0
    %113 = vmatprep.subr.mxu0 0.0
    %114 = vmatpush1.msra.mxu0 0.0
    %115 = vmatprep.subr.mxu0 0.0
    %116 = vmatpush1.msra.mxu0 0.0
    %117 = vmatprep.subr.mxu0 0.0
    %118 = vmatpush1.msra.mxu0 0.0
    %119 = vmatprep.subr.mxu0 0.0
    %120 = vmatpush1.msra.mxu0 0.0
    %121 = vmatprep.subr.mxu0 0.0
    %122 = vmatpush1.msra.mxu0 0.0
    %123 = vmatprep.subr.mxu0 0.0
    %124 = vmatpush1.msra.mxu0 0.0
    %125 = vmatprep.subr.mxu0 0.0
    %126 = vmatpush1.msra.mxu0 0.0
    %127 = vmatprep.subr.mxu0 0.0
    %128 = vmatpush1.msra.mxu0 0.0
    %129 = vmatprep.subr.mxu0 0.0
    %130 = vmatpush1.msra.mxu0 0.0
    %131 = vmatprep.subr.mxu0 0.0
    %132 = vmatpush1.msra.mxu0 0.0
    %133 = vmatprep.subr.mxu0 0.0
    %134 = vmatpush1.msra.mxu0 0.0
    %135 = vmatprep.subr.mxu0 0.0
    %136 = vmatpush1.msra.mxu0 0.0
    %137 = vmatprep.subr.mxu0 0.0
    %138 = vmatpush1.msra.mxu0 0.0
    %139 = vmatprep.subr.mxu0 0.0
    %140 = vmatpush1.msra.mxu0 0.0
    %141 = vmatprep.mubr.f32.mxu0 0.0
    %142 = vmatmul.mubr.f32.gmra.mrb[0].mxu0 %v53
    %v143 = vpop.f32.mrb[0].mxu0
    %v144 = vadd.f32 %v75, %v143
    %v145 = vpop.f32.mrb[0].mxu0
    %146 = vdwg.mxu0
    %147 = vst [vmem:[#allocation7] sm:$0xff] %v144
    %v148 = vmax.f32 %v144, 0.0
    %149 = vst [vmem:[#allocation8] sm:$0xff] %v148
    %v150 = vld [vmem:[#allocation5] sm:$0xff]
    %v151 = vld [vmem:[#allocation5 + $0x8] sm:$0xff]
    %v152 = vld [vmem:[#allocation5 + $0x10] sm:$0xff]
    %v153 = vld [vmem:[#allocation5 + $0x18] sm:$0xff]
    %v154 = vld [vmem:[#allocation5 + $0x20] sm:$0xff]
    %v155 = vld [vmem:[#allocation5 + $0x28] sm:$0xff]
    %v156 = vld [vmem:[#allocation5 + $0x30] sm:$0xff]
    %v157 = vld [vmem:[#allocation5 + $0x38] sm:$0xff]
    %v158 = vld [vmem:[#allocation5 + $0x40] sm:$0xff]
    %v159 = vld [vmem:[#allocation5 + $0x48] sm:$0xff]
    %v160 = vld [vmem:[#allocation5 + $0x50] sm:$0xff]
    %v161 = vld [vmem:[#allocation5 + $0x58] sm:$0xff]
    %v162 = vld [vmem:[#allocation5 + $0x60] sm:$0xff]
    %v163 = vld [vmem:[#allocation5 + $0x68] sm:$0xff]
    %v164 = vld [vmem:[#allocation5 + $0x70] sm:$0xff]
    %v165 = vld [vmem:[#allocation5 + $0x78] sm:$0xff]
    %v166 = vld [vmem:[%s4] sm:$0x1]
    %v168 = vlaneseq
    %v169 = vshrl.u32 %v168, 7
    %v170 = vsub.s32 0, %v169
    %v171 = vrot.slane %v166, %v170
    %173 = vmatprep.subr.mxu0 0.0
    %174 = vmatpush1.msra.mxu0 %v150
    %175 = vmatprep.subr.mxu0 0.0
    %176 = vmatpush1.msra.mxu0 %v151
    %177 = vmatprep.subr.mxu0 0.0
    %178 = vmatpush1.msra.mxu0 %v152
    %179 = vmatprep.subr.mxu0 0.0
    %180 = vmatpush1.msra.mxu0 %v153
    %181 = vmatprep.subr.mxu0 0.0
    %182 = vmatpush1.msra.mxu0 %v154
    %183 = vmatprep.subr.mxu0 0.0
    %184 = vmatpush1.msra.mxu0 %v155
    %185 = vmatprep.subr.mxu0 0.0
    %186 = vmatpush1.msra.mxu0 %v156
    %187 = vmatprep.subr.mxu0 0.0
    %188 = vmatpush1.msra.mxu0 %v157
    %189 = vmatprep.subr.mxu0 0.0
    %190 = vmatpush1.msra.mxu0 %v158
    %191 = vmatprep.subr.mxu0 0.0
    %192 = vmatpush1.msra.mxu0 %v159
    %193 = vmatprep.subr.mxu0 0.0
    %194 = vmatpush1.msra.mxu0 %v160
    %195 = vmatprep.subr.mxu0 0.0
    %196 = vmatpush1.msra.mxu0 %v161
    %197 = vmatprep.subr.mxu0 0.0
    %198 = vmatpush1.msra.mxu0 %v162
    %199 = vmatprep.subr.mxu0 0.0
    %200 = vmatpush1.msra.mxu0 %v163
    %201 = vmatprep.subr.mxu0 0.0
    %202 = vmatpush1.msra.mxu0 %v164
    %203 = vmatprep.subr.mxu0 0.0
    %204 = vmatpush1.msra.mxu0 %v165
    %205 = vmatprep.subr.mxu0 0.0
    %206 = vmatpush1.msra.mxu0 0.0
    %207 = vmatprep.subr.mxu0 0.0
    %208 = vmatpush1.msra.mxu0 0.0
    %209 = vmatprep.subr.mxu0 0.0
    %210 = vmatpush1.msra.mxu0 0.0
    %211 = vmatprep.subr.mxu0 0.0
    %212 = vmatpush1.msra.mxu0 0.0
    %213 = vmatprep.subr.mxu0 0.0
    %214 = vmatpush1.msra.mxu0 0.0
    %215 = vmatprep.subr.mxu0 0.0
    %216 = vmatpush1.msra.mxu0 0.0
    %217 = vmatprep.subr.mxu0 0.0
    %218 = vmatpush1.msra.mxu0 0.0
    %219 = vmatprep.subr.mxu0 0.0
    %220 = vmatpush1.msra.mxu0 0.0
    %221 = vmatprep.subr.mxu0 0.0
    %222 = vmatpush1.msra.mxu0 0.0
    %223 = vmatprep.subr.mxu0 0.0
    %224 = vmatpush1.msra.mxu0 0.0
    %225 = vmatprep.subr.mxu0 0.0
    %226 = vmatpush1.msra.mxu0 0.0
    %227 = vmatprep.subr.mxu0 0.0
    %228 = vmatpush1.msra.mxu0 0.0
    %229 = vmatprep.subr.mxu0 0.0
    %230 = vmatpush1.msra.mxu0 0.0
    %231 = vmatprep.subr.mxu0 0.0
    %232 = vmatpush1.msra.mxu0 0.0
    %233 = vmatprep.subr.mxu0 0.0
    %234 = vmatpush1.msra.mxu0 0.0
    %235 = vmatprep.subr.mxu0 0.0
    %236 = vmatpush1.msra.mxu0 0.0
    %237 = vmatprep.mubr.f32.mxu0 0.0
    %238 = vmatmul.mubr.f32.gmra.mrb[0].mxu0 %v148
    %v239 = vpop.f32.mrb[0].mxu0
    %v240 = vadd.f32 %v171, %v239
    %v241 = vpop.f32.mrb[0].mxu0
    %242 = vdwg.mxu0
    %243 = vst [vmem:[#allocation10] sm:$0xff] %v240
    // Predicated region
    $region30: #{_mlp_verbose_padded.1} parent=1 // pred_check
      _
    $region31: #{_mlp_verbose_padded.1} parent=1 // pred_check_branch
      %245 = sbr.rel (0) target = $region33
    $region32: #{_mlp_verbose_padded.1} parent=1 // pred_region
      %s247 = ssub.s32 128, 128
      %248 = vsyncadd [#allocation4], %s247
      %s250 = sshll.u32 [#allocation7], 4
      %s251 = int_to_ptr.vmem [resolvable:$true] %s250
      %253 = dma.vmem_to_hbm [thread:$0]  %s251, 128, %s5, [#allocation4]
    $region33: #{_mlp_verbose_padded.1} parent=1 // pred_fallthru
      _
    // Predicated region
    $region34: #{_mlp_verbose_padded.1} parent=1 // pred_check
      _
    $region35: #{_mlp_verbose_padded.1} parent=1 // pred_check_branch
      %255 = sbr.rel (0) target = $region37
    $region36: #{_mlp_verbose_padded.1} parent=1 // pred_region
      %s257 = ssub.s32 128, 128
      %258 = vsyncadd [#allocation9], %s257
      %s260 = sshll.u32 [#allocation8], 4
      %s261 = int_to_ptr.vmem [resolvable:$true] %s260
      %263 = dma.vmem_to_hbm [thread:$0]  %s261, 128, %s6, [#allocation9]
    $region37: #{_mlp_verbose_padded.1} parent=1 // pred_fallthru
      _
    // Predicated region
    $region38: #{_mlp_verbose_padded.1} parent=1 // pred_check
      _
    $region39: #{_mlp_verbose_padded.1} parent=1 // pred_check_branch
      %265 = sbr.rel (0) target = $region41
    $region40: #{_mlp_verbose_padded.1} parent=1 // pred_region
      %s267 = ssub.s32 128, 128
      %268 = vsyncadd [#allocation9], %s267
      %s270 = sshll.u32 [#allocation10], 4
      %s271 = int_to_ptr.vmem [resolvable:$true] %s270
      %273 = dma.vmem_to_hbm [thread:$0]  %s271, 128, %s7, [#allocation9]
    $region41: #{_mlp_verbose_padded.1} parent=1 // pred_fallthru
      _
    // Predicated region
    $region42: #{_mlp_verbose_padded.1} parent=1 // pred_check
      _
    $region43: #{_mlp_verbose_padded.1} parent=1 // pred_check_branch
      %275 = sbr.rel (0) target = $region45
    $region44: #{_mlp_verbose_padded.1} parent=1 // pred_region
      %276 = dma.done [#allocation4], 128
    $region45: #{_mlp_verbose_padded.1} parent=1 // pred_fallthru
      _
    // Predicated region
    $region46: #{_mlp_verbose_padded.1} parent=1 // pred_check
      _
    $region47: #{_mlp_verbose_padded.1} parent=1 // pred_check_branch
      %278 = sbr.rel (0) target = $region49
    $region48: #{_mlp_verbose_padded.1} parent=1 // pred_region
      %279 = dma.done [#allocation9], 128
    $region49: #{_mlp_verbose_padded.1} parent=1 // pred_fallthru
      _
    // Predicated region
    $region50: #{_mlp_verbose_padded.1} parent=1 // pred_check
      _
    $region51: #{_mlp_verbose_padded.1} parent=1 // pred_check_branch
      %281 = sbr.rel (0) target = $region53
    $region52: #{_mlp_verbose_padded.1} parent=1 // pred_region
      %282 = dma.done [#allocation9], 128
    $region53: #{_mlp_verbose_padded.1} parent=1 // pred_fallthru
      _
    %283 = vsyncpa [#allocation3], 1
    %284 = vsyncpa [#allocation6], 1
    %285 = vsyncpa [#allocation4], 1
    %286 = vsyncpa [#allocation9], 1

</llo_original>
